<compile_context>
chip_gen: v5e
topology: v5e:2x2
jax: 0.10.0
libtpu: 0.0.40
codegen_flags: <defaults>
</compile_context>

<pallas_src>
import math
import functools

import jax
import jax.numpy as jnp
from jax.experimental import pallas as pl
from jax.experimental.pallas import tpu as pltpu


def _l2_normalize(v):
    # Matches F.normalize: v / max(||v||_2, 1e-12), row-wise.
    n = jnp.sqrt(jnp.sum(v * v, axis=-1, keepdims=True))
    return v / jnp.maximum(n, 1e-12)


def _round_up(v, m):
    return ((v + m - 1) // m) * m


def _arcface_kernel(has_lbl_ref, xn_ref, wn_ref, lbl_ref, out_ref, *,
                    cos_m, sin_m, th, mm, s, tn):
    i = pl.program_id(0)
    j = pl.program_id(1)
    num_j = pl.num_programs(1)

    # cosine = xn @ wn.T, contracting the feature dims of both operands so the
    # (tn, D) weight tile is fed to the MXU in its natural layout (no XLU
    # transpose).  Operands may be bf16; accumulation is f32.
    cosine = jax.lax.dot_general(
        xn_ref[...], wn_ref[...],
        dimension_numbers=(((1,), (1,)), ((), ())),
        preferred_element_type=jnp.float32,
    )

    tile_has_label = has_lbl_ref[i * num_j + j] != 0

    # Fast path: no label column falls inside this (i, j) tile, so the one-hot
    # blend degenerates to s * cosine -> skip the sqrt / margin math.
    @pl.when(jnp.logical_not(tile_has_label))
    def _():
        out_ref[...] = (cosine * s).astype(out_ref.dtype)

    @pl.when(tile_has_label)
    def _():
        # max(., 0) guards the sqrt when |cosine| exceeds 1 by rounding; it only
        # differs from the un-clamped PyTorch code where PyTorch would emit NaN.
        sine = jnp.sqrt(jnp.maximum(1.0 - cosine * cosine, 0.0))
        phi = cosine * cos_m - sine * sin_m
        phi = jnp.where(cosine > th, phi, cosine - mm)   # easy_margin=False
        col = j * tn + jax.lax.broadcasted_iota(jnp.int32, cosine.shape, 1)
        is_target = col == lbl_ref[...]                  # (tb,1) -> (tb,tn)
        out_ref[...] = (jnp.where(is_target, phi, cosine) * s).astype(out_ref.dtype)


def _choose_tiles(B, N, D, itemsize):
    tb = min(_round_up(B, 8), 512)        # whole batch per tile when it fits
    tn = 512
    # Keep >= 2 class tiles when N allows so a 2-TC chip (v7x) can shard axis j.
    while tn > 128 and pl.cdiv(N, tn) < 2:
        tn //= 2

    def vmem_bytes(tb_, tn_):             # double-buffered tiles
        return 2 * (tb_ * D * itemsize    # x tile
                    + tn_ * D * itemsize  # W tile
                    + tb_ * tn_ * 4       # output tile (f32)
                    + tb_ * 128 * 4)      # label tile (lane-padded)

    budget = 40 * 1024 * 1024             # headroom vs v7x's 64 MiB physical VMEM
    while vmem_bytes(tb, tn) > budget and tn > 256:
        tn //= 2
    while vmem_bytes(tb, tn) > budget and tb > 64:
        tb //= 2
    return tb, tn


def arcface_forward(x, weight, label, *, s=32.0, m=0.5,
                    tb=None, tn=None, mxu_dtype=jnp.bfloat16):
    """ArcMarginProduct_wujiyang.forward (easy_margin=False)."""
    B, D = x.shape
    N, D2 = weight.shape
    assert D == D2

    cos_m = math.cos(m)
    sin_m = math.sin(m)
    th = math.cos(math.pi - m)
    mm = math.sin(math.pi - m) * m

    itemsize = jnp.dtype(mxu_dtype).itemsize
    tb_d, tn_d = _choose_tiles(B, N, D, itemsize)
    tb = tb_d if tb is None else tb
    tn = tn_d if tn is None else tn
    assert tb % 8 == 0 and tn % 128 == 0

    Bp = _round_up(B, tb)
    Np = _round_up(N, tn)
    num_i, num_j = Bp // tb, Np // tn

    # Row L2-normalization hoisted out of the tile loop (one cheap XLA pass);
    # the kernel only does the cosine matmul + margin epilogue.  Casting the
    # normalized operands to bf16 halves HBM traffic and hits native MXU rates;
    # accumulation and all margin math stay f32.
    xn = _l2_normalize(x.astype(jnp.float32))
    wn = _l2_normalize(weight.astype(jnp.float32))
    xn = jnp.pad(xn, ((0, Bp - B), (0, 0))).astype(mxu_dtype)
    wn = jnp.pad(wn, ((0, Np - N), (0, 0))).astype(mxu_dtype)

    lbl = label.astype(jnp.int32)
    lbl2d = jnp.pad(lbl, (0, Bp - B)).reshape(Bp, 1)

    # (num_i*num_j,) int32 mask: does tile (i, j) contain any row's label column?
    has_lbl = jnp.zeros((num_i * num_j,), jnp.int32)
    has_lbl = has_lbl.at[(jnp.arange(B) // tb) * num_j + lbl // tn].set(1)

    kernel = functools.partial(
        _arcface_kernel, cos_m=cos_m, sin_m=sin_m, th=th, mm=mm, s=s, tn=tn)

    out = pl.pallas_call(
        kernel,
        out_shape=jax.ShapeDtypeStruct((Bp, Np), jnp.float32),
        grid_spec=pltpu.PrefetchScalarGridSpec(
            num_scalar_prefetch=1,
            grid=(num_i, num_j),
            in_specs=[
                pl.BlockSpec((tb, D), lambda i, j, hl: (i, 0)),   # x tile, full D
                pl.BlockSpec((tn, D), lambda i, j, hl: (j, 0)),   # W tile, full D
                pl.BlockSpec((tb, 1), lambda i, j, hl: (i, 0)),   # labels (per i)
            ],
            out_specs=pl.BlockSpec((tb, tn), lambda i, j, hl: (i, j)),
        ),
        compiler_params=pltpu.CompilerParams(
            dimension_semantics=("parallel", "parallel"),
            vmem_limit_bytes=48 * 1024 * 1024,
        ),
    )(has_lbl, xn, wn, lbl2d)

    return out[:B, :N]


def arcface_reference(x, weight, label, *, s=32.0, m=0.5, mxu_dtype=jnp.float32):
    """Pure-JAX reference mirroring the PyTorch forward (optionally bf16 matmul)."""
    cos_m, sin_m = math.cos(m), math.sin(m)
    th = math.cos(math.pi - m)
    mm = math.sin(math.pi - m) * m
    xn = _l2_normalize(x.astype(jnp.float32)).astype(mxu_dtype)
    wn = _l2_normalize(weight.astype(jnp.float32)).astype(mxu_dtype)
    cosine = jax.lax.dot_general(
        xn, wn, dimension_numbers=(((1,), (1,)), ((), ())),
        preferred_element_type=jnp.float32)
    sine = jnp.sqrt(jnp.maximum(1.0 - cosine * cosine, 0.0))
    phi = cosine * cos_m - sine * sin_m
    phi = jnp.where(cosine > th, phi, cosine - mm)
    one_hot = jax.nn.one_hot(label, weight.shape[0], dtype=cosine.dtype)
    return (one_hot * phi + (1.0 - one_hot) * cosine) * s


if __name__ == "__main__":
    # Small shapes consistent with the module (in_feature=128 default; a modest
    # class count that also exercises N-padding and multiple class tiles).
    B, D, N = 32, 128, 1000
    key = jax.random.PRNGKey(0)
    kx, kw, kl = jax.random.split(key, 3)

    x = jax.random.normal(kx, (B, D), dtype=jnp.float32)

    # Xavier-uniform init for weight of shape (out_feature, in_feature).
    bound = math.sqrt(6.0 / (D + N))
    weight = jax.random.uniform(kw, (N, D), minval=-bound, maxval=bound,
                                dtype=jnp.float32)

    # Labels concentrated in the lower classes so at least one class tile has
    # no label column -> exercises both pl.when branches of the kernel.
    label = jax.random.randint(kl, (B,), 0, N // 2, dtype=jnp.int32)

    # Default fast path: bf16 MXU operands, f32 accumulation / epilogue.
    out = jax.block_until_ready(arcface_forward(x, weight, label))
    assert out.shape == (B, N)
    ref_bf16 = arcface_reference(x, weight, label, mxu_dtype=jnp.bfloat16)
    assert jnp.allclose(out, ref_bf16, atol=2e-3, rtol=2e-3), "bf16 path mismatch"

    # Full-precision path: matches the PyTorch-faithful f32 reference tightly.
    out_f32 = jax.block_until_ready(
        arcface_forward(x, weight, label, mxu_dtype=jnp.float32))
    ref_f32 = arcface_reference(x, weight, label)
    assert jnp.allclose(out_f32, ref_f32, atol=5e-4, rtol=5e-4), "f32 path mismatch"

    # Sanity: bf16 fast path stays close to the exact f32 logits.
    assert float(jnp.max(jnp.abs(out - ref_f32))) < 0.2

    print("KERNEL_OK")
</pallas_src>

<mosaic_0001>
module attributes {stable_mosaic.version = 11 : i64} {
  func.func @_arcface_kernel(%arg0: i32, %arg1: i32, %arg2: memref<2xi32, #tpu.memory_space<smem>>, %arg3: memref<32x128xbf16, #tpu.memory_space<vmem>>, %arg4: memref<512x128xbf16, #tpu.memory_space<vmem>>, %arg5: memref<32x1xi32, #tpu.memory_space<vmem>>, %arg6: memref<32x512xf32, #tpu.memory_space<vmem>>) attributes {dimension_semantics = [#tpu.dimension_semantics<parallel>, #tpu.dimension_semantics<parallel>], iteration_bounds = array<i64: 1, 2>, scalar_prefetch = 1 : i64, scratch_operands = 0 : i64, tpu.core_type = #tpu.core_type<tc>, window_params = [{transform_indices = @transform_0, window_bounds = array<i64: 32, 128>}, {transform_indices = @transform_1, window_bounds = array<i64: 512, 128>}, {transform_indices = @transform_2, window_bounds = array<i64: 32, 1>}, {transform_indices = @transform_3, window_bounds = array<i64: 32, 512>}]} {
    %c0 = arith.constant 0 : index
    %c0_0 = arith.constant 0 : index
    %0 = vector.load %arg3[%c0, %c0_0] : memref<32x128xbf16, #tpu.memory_space<vmem>>, vector<32x128xbf16>
    %c0_1 = arith.constant 0 : index
    %c0_2 = arith.constant 0 : index
    %1 = vector.load %arg4[%c0_1, %c0_2] : memref<512x128xbf16, #tpu.memory_space<vmem>>, vector<512x128xbf16>
    %cst = arith.constant dense<0.000000e+00> : vector<32x512xf32>
    %2 = tpu.matmul %0, %1, %cst {dimension_numbers = #tpu.dot_dimension_numbers<[1], [1], [0], [0], [0, 0, 1, 0], [], []>} : vector<32x128xbf16>, vector<512x128xbf16>, vector<32x512xf32> -> vector<32x512xf32>
    %c2_i32 = arith.constant 2 : i32
    %3 = arith.muli %arg0, %c2_i32 : i32
    %4 = arith.addi %3, %arg1 : i32
    %5 = arith.index_cast %4 : i32 to index
    %6 = memref.load %arg2[%5] : memref<2xi32, #tpu.memory_space<smem>>
    %c0_i32 = arith.constant 0 : i32
    %7 = arith.cmpi ne, %6, %c0_i32 : i32
    %true = arith.constant true
    %8 = arith.xori %7, %true : i1
    %9 = arith.extui %8 : i1 to i32
    %c0_i32_3 = arith.constant 0 : i32
    %10 = arith.cmpi ne, %9, %c0_i32_3 : i32
    scf.if %10 {
      %cst_5 = arith.constant 3.200000e+01 : f32
      %13 = vector.broadcast %cst_5 : f32 to vector<32x512xf32>
      %14 = arith.mulf %2, %13 : vector<32x512xf32>
      %c0_6 = arith.constant 0 : index
      %c0_7 = arith.constant 0 : index
      %15 = vector.load %arg6[%c0_6, %c0_7] : memref<32x512xf32, #tpu.memory_space<vmem>>, vector<32x512xf32>
      tpu.vector_store %arg6[%c0_6, %c0_7], %14 {strides = array<i32>} : memref<32x512xf32, #tpu.memory_space<vmem>>, vector<32x512xf32>,
    } else {
    }
    %11 = arith.extui %7 : i1 to i32
    %c0_i32_4 = arith.constant 0 : i32
    %12 = arith.cmpi ne, %11, %c0_i32_4 : i32
    scf.if %12 {
      %13 = arith.mulf %2, %2 : vector<32x512xf32>
      %cst_5 = arith.constant 1.000000e+00 : f32
      %14 = vector.broadcast %cst_5 : f32 to vector<32x512xf32>
      %15 = arith.subf %14, %13 : vector<32x512xf32>
      %cst_6 = arith.constant 0.000000e+00 : f32
      %16 = vector.broadcast %cst_6 : f32 to vector<32x512xf32>
      %17 = arith.maximumf %15, %16 : vector<32x512xf32>
      %18 = math.sqrt %17 : vector<32x512xf32>
      %cst_7 = arith.constant 0.87758255 : f32
      %19 = vector.broadcast %cst_7 : f32 to vector<32x512xf32>
      %20 = arith.mulf %2, %19 : vector<32x512xf32>
      %cst_8 = arith.constant 0.47942555 : f32
      %21 = vector.broadcast %cst_8 : f32 to vector<32x512xf32>
      %22 = arith.mulf %18, %21 : vector<32x512xf32>
      %23 = arith.subf %20, %22 : vector<32x512xf32>
      %cst_9 = arith.constant -0.87758255 : f32
      %24 = vector.broadcast %cst_9 : f32 to vector<32x512xf32>
      %25 = arith.cmpf ogt, %2, %24 : vector<32x512xf32>
      %cst_10 = arith.constant 0.239712775 : f32
      %26 = vector.broadcast %cst_10 : f32 to vector<32x512xf32>
      %27 = arith.subf %2, %26 : vector<32x512xf32>
      %28 = arith.select %25, %23, %27 : vector<32x512xi1>, vector<32x512xf32>
      %c512_i32 = arith.constant 512 : i32
      %29 = arith.muli %arg1, %c512_i32 : i32
      %30 = tpu.iota {dimensions = array<i32: 1>} : vector<32x512xi32>
      %31 = vector.broadcast %29 : i32 to vector<32x512xi32>
      %32 = arith.addi %31, %30 : vector<32x512xi32>
      %c0_11 = arith.constant 0 : index
      %c0_12 = arith.constant 0 : index
      %33 = vector.load %arg5[%c0_11, %c0_12] : memref<32x1xi32, #tpu.memory_space<vmem>>, vector<32x1xi32>
      %34 = vector.broadcast %33 : vector<32x1xi32> to vector<32x512xi32>
      %35 = arith.cmpi eq, %32, %34 : vector<32x512xi32>
      %36 = arith.select %35, %28, %2 : vector<32x512xi1>, vector<32x512xf32>
      %cst_13 = arith.constant 3.200000e+01 : f32
      %37 = vector.broadcast %cst_13 : f32 to vector<32x512xf32>
      %38 = arith.mulf %36, %37 : vector<32x512xf32>
      %c0_14 = arith.constant 0 : index
      %c0_15 = arith.constant 0 : index
      %39 = vector.load %arg6[%c0_14, %c0_15] : memref<32x512xf32, #tpu.memory_space<vmem>>, vector<32x512xf32>
      tpu.vector_store %arg6[%c0_14, %c0_15], %38 {strides = array<i32>} : memref<32x512xf32, #tpu.memory_space<vmem>>, vector<32x512xf32>,
    } else {
    }
    return
  }
  func.func @transform_0(%arg0: i32, %arg1: i32, %arg2: memref<2xi32, #tpu.memory_space<smem>>) -> (i32, i32) {
    %c0_i32 = arith.constant 0 : i32
    %c0_i32_0 = arith.constant 0 : i32
    return %arg0, %c0_i32 : i32, i32
  }
  func.func @transform_1(%arg0: i32, %arg1: i32, %arg2: memref<2xi32, #tpu.memory_space<smem>>) -> (i32, i32) {
    %c0_i32 = arith.constant 0 : i32
    %c0_i32_0 = arith.constant 0 : i32
    return %arg1, %c0_i32 : i32, i32
  }
  func.func @transform_2(%arg0: i32, %arg1: i32, %arg2: memref<2xi32, #tpu.memory_space<smem>>) -> (i32, i32) {
    %c0_i32 = arith.constant 0 : i32
    %c0_i32_0 = arith.constant 0 : i32
    return %arg0, %c0_i32 : i32, i32
  }
  func.func @transform_3(%arg0: i32, %arg1: i32, %arg2: memref<2xi32, #tpu.memory_space<smem>>) -> (i32, i32) {
    %c0_i32 = arith.constant 0 : i32
    return %arg0, %arg1 : i32, i32
  }
}

</mosaic_0001>

<llo_original>
// kernel: tpu_custom_call.1
$region0: #{tpu_custom_call.1}
  #allocation0 [shape = 'u32[]', space=smem, size = 0x4, offset = 0x4, fixed_abs, tag = 'smem constant byte address 0x4 - core index']
  #allocation1 [shape = 'u32[72,128]{1,0:T(1,128)}', space=vmem, size = 0x9000, scoped, tag = 'internal scratch']
  #allocation2 [shape = 's32[1]{0}', space=sflag, size = 0x4, scoped, tag = 'scoped memory for tpu_custom_call.1']
  #allocation3 [shape = 'u8[512]{0}', space=smem, size = 0x200, scoped, tag = 'prefetched SMEM operand 0']
  %s0 = inlined_call_operand.vmem [shape: s32[2], index: 0, kind: input, shape index: {}]
  %s1 = inlined_call_operand.vmem [shape: bf16[32,128], index: 1, kind: input, shape index: {}]
  %s2 = inlined_call_operand.hbm [shape: bf16[1024,128], index: 2, kind: input, shape index: {}]
  %s3 = inlined_call_operand.vmem [shape: s32[32,1], index: 3, kind: input, shape index: {}]
  %s4 = inlined_call_operand.hbm [shape: f32[32,1024], index: 4, kind: output, shape index: {}]
  %s5 = sld [smem:[#allocation0]]
  $region57: #{tpu_custom_call.1} parent=0
    _
  %s7 = ssub.s32 1, %s5
  %s8 = scalar_select 0, %s7, %s5
  %s10 = sshll.u32 %s0, 4
  %s11 = int_to_ptr.vmem [resolvable:$true] %s10
  %13 = dma.vmem_to_smem %s11, 16, [#allocation3], [#allocation2]
  %15 = dma.done [#allocation2], 16
  %16 = sfence
  $region1: #{tpu_custom_call.1} parent=0
    #allocation4 [shape = 'u8[262144]{0}', space=vmem, size = 0x40000, scoped, tag = 'input window, operand 2']
    #allocation5 [shape = 's32[2]{0}', space=sflag, size = 0x8, scoped, tag = 'scoped memory for tpu_custom_call.1']
    #allocation6 [shape = 's32[2]{0}', space=sflag, size = 0x8, scoped, tag = 'scoped memory for tpu_custom_call.1']
    #allocation7 [shape = 'u8[131072]{0}', space=vmem, size = 0x20000, scoped, tag = 'output window, operand 0']
    %17 = vsyncpa [#allocation5], 0
    %s18 = scalar_lea.sflag [#allocation5], 1
    %19 = vsyncpa %s18, 0
    %20 = vsyncpa [#allocation6], 0
    %s21 = scalar_lea.sflag [#allocation6], 1
    %22 = vsyncpa %s21, 0
    loop: start=0, step=1, limit=4
    $region2: #{tpu_custom_call.1} parent=1 // loop_pre_header
      _
    $region3: #{tpu_custom_call.1} parent=1 // loop_header
      %s24 = sphi 0, %s28
      %p25 = scmp.ge.s32.totalorder %s24, 4
      %s31 = sphi 0, %s43
      %s32 = sphi 0, %s39
      %s33 = sphi 0, %s31
      %s34 = sphi 0, %s32
      %s35 = sphi 0, %s33
      %s36 = sphi 0, %s34
      %s46 = sphi 0, %s48
      %s49 = sphi 0, %s46
      %s50 = sphi 0, %s49
      %s66 = sphi 0, %s50
      %s72 = sphi 0, %s74
      %s75 = sphi 0, %s72
      %s76 = sphi 0, %s75
      %s92 = sphi 0, %s76
      %s98 = sphi 0, %s100
      %s101 = sphi 0, %s98
      %s102 = sphi 0, %s101
      %s118 = sphi 0, %s102
      %s126 = sphi 0, %s128
      %s129 = sphi 0, %s126
      %s130 = sphi 0, %s129
      %s146 = sphi 0, %s130
    $region4: #{tpu_custom_call.1} parent=1 // loop_header_branch
      %27 = sbr.rel (%p25) target = $region8
    $region5: #{tpu_custom_call.1} parent=1 // loop_body
      %s29 = ssub.s32 %s24, 1
      %s30 = ssub.s32 %s24, 2
      %s37 = sadd.s32 1, %s32
      %p38 = scmp.ge.s32.totalorder %s37, 2
      %s39 = scalar_select %p38, 0, %s37
      %s40 = sadd.s32 1, %s31
      %s41 = scalar_select %p38, %s40, %s31
      %p42 = scmp.ge.s32.totalorder %s41, 1
      %s43 = scalar_select %p42, 0, %s41
      %s44 = ssub.s32 %s31, %s43
      %p45 = scmp.eq.s32.totalorder %s44, 0
      %s47 = sadd.s32 %s46, 1
      %s48 = scalar_select %p45, %s46, %s47
      %p51 = pneg %p45
      %p52 = scmp.eq.s32.totalorder %s24, 1
      %p53 = por %p51, %p52
      %p54 = scmp.ne.s32.totalorder %s46, %s49
      %p55 = scmp.eq.s32.totalorder %s24, 0
      %p56 = por %p54, %p55
      %p57 = scmp.ne.s32.totalorder %s46, %s49
      %p58 = scmp.eq.s32.totalorder %s29, 1
      %p59 = por %p57, %p58
      %p60 = scmp.ne.s32.totalorder %s49, %s50
      %p61 = scmp.eq.s32.totalorder %s29, 0
      %p62 = por %p60, %p61
      %p63 = scmp.ne.s32.totalorder %s49, %s50
      %p64 = scmp.eq.s32.totalorder %s30, 1
      %p65 = por %p63, %p64
      %p67 = scmp.ne.s32.totalorder %s50, %s66
      %p68 = scmp.eq.s32.totalorder %s30, 0
      %p69 = por %p67, %p68
      %s70 = ssub.s32 %s32, %s39
      %p71 = scmp.eq.s32.totalorder %s70, 0
      %s73 = sadd.s32 %s72, 1
      %s74 = scalar_select %p71, %s72, %s73
      %p77 = pneg %p71
      %p78 = scmp.eq.s32.totalorder %s24, 1
      %p79 = por %p77, %p78
      %p80 = scmp.ne.s32.totalorder %s72, %s75
      %p81 = scmp.eq.s32.totalorder %s24, 0
      %p82 = por %p80, %p81
      %p83 = scmp.ne.s32.totalorder %s72, %s75
      %p84 = scmp.eq.s32.totalorder %s29, 1
      %p85 = por %p83, %p84
      %p86 = scmp.ne.s32.totalorder %s75, %s76
      %p87 = scmp.eq.s32.totalorder %s29, 0
      %p88 = por %p86, %p87
      %p89 = scmp.ne.s32.totalorder %s75, %s76
      %p90 = scmp.eq.s32.totalorder %s30, 1
      %p91 = por %p89, %p90
      %p93 = scmp.ne.s32.totalorder %s76, %s92
      %p94 = scmp.eq.s32.totalorder %s30, 0
      %p95 = por %p93, %p94
      %s96 = ssub.s32 %s31, %s43
      %p97 = scmp.eq.s32.totalorder %s96, 0
      %s99 = sadd.s32 %s98, 1
      %s100 = scalar_select %p97, %s98, %s99
      %p103 = pneg %p97
      %p104 = scmp.eq.s32.totalorder %s24, 1
      %p105 = por %p103, %p104
      %p106 = scmp.ne.s32.totalorder %s98, %s101
      %p107 = scmp.eq.s32.totalorder %s24, 0
      %p108 = por %p106, %p107
      %p109 = scmp.ne.s32.totalorder %s98, %s101
      %p110 = scmp.eq.s32.totalorder %s29, 1
      %p111 = por %p109, %p110
      %p112 = scmp.ne.s32.totalorder %s101, %s102
      %p113 = scmp.eq.s32.totalorder %s29, 0
      %p114 = por %p112, %p113
      %p115 = scmp.ne.s32.totalorder %s101, %s102
      %p116 = scmp.eq.s32.totalorder %s30, 1
      %p117 = por %p115, %p116
      %p119 = scmp.ne.s32.totalorder %s102, %s118
      %p120 = scmp.eq.s32.totalorder %s30, 0
      %p121 = por %p119, %p120
      %s122 = ssub.s32 %s31, %s43
      %s123 = ssub.s32 %s32, %s39
      %s124 = sor.u32 %s122, %s123
      %p125 = scmp.eq.s32.totalorder %s124, 0
      %s127 = sadd.s32 %s126, 1
      %s128 = scalar_select %p125, %s126, %s127
      %p131 = pneg %p125
      %p132 = scmp.eq.s32.totalorder %s24, 1
      %p133 = por %p131, %p132
      %p134 = scmp.ne.s32.totalorder %s126, %s129
      %p135 = scmp.eq.s32.totalorder %s24, 0
      %p136 = por %p134, %p135
      %p137 = scmp.ne.s32.totalorder %s126, %s129
      %p138 = scmp.eq.s32.totalorder %s29, 1
      %p139 = por %p137, %p138
      %p140 = scmp.ne.s32.totalorder %s129, %s130
      %p141 = scmp.eq.s32.totalorder %s29, 0
      %p142 = por %p140, %p141
      %p143 = scmp.ne.s32.totalorder %s129, %s130
      %p144 = scmp.eq.s32.totalorder %s30, 1
      %p145 = por %p143, %p144
      %p147 = scmp.ne.s32.totalorder %s130, %s146
      %p148 = scmp.eq.s32.totalorder %s30, 0
      %p149 = por %p147, %p148
      %p150 = scmp.le.s32.totalorder 1, %s24
      %p151 = scmp.lt.s32.totalorder %s24, 3
      %p152 = pnand %p150, %p151
      %p153 = pneg %p152
      // Predicated region
      $region9: #{tpu_custom_call.1} parent=5 // pred_check
        _
      $region10: #{tpu_custom_call.1} parent=5 // pred_check_branch
        %155 = sbr.rel (%p152) target = $region12
      $region11: #{tpu_custom_call.1} parent=5 // pred_region
        %s156 = ssub.s32 %s24, 1
        // Predicated region
        $region13: #{tpu_custom_call.1} parent=11 // pred_check
          %p157 = pneg %p62
        $region14: #{tpu_custom_call.1} parent=11 // pred_check_branch
          %159 = sbr.rel (%p157) target = $region16
        $region15: #{tpu_custom_call.1} parent=11 // pred_region
          %s160 = smul.u32 4, %s33
          %p161 = scmp.lt.s32.totalorder %s160, 3
          %s162 = scalar_select %p161, %s160, 3
          %s163 = smul.addr %s162, 4
          %s164 = scalar_lea.vmem %s1, %s163
          %s165 = smul.u32 4, %s33
        $region16: #{tpu_custom_call.1} parent=11 // pred_fallthru
          _
        // Predicated region
        $region17: #{tpu_custom_call.1} parent=11 // pred_check
          %p166 = pneg %p114
        $region18: #{tpu_custom_call.1} parent=11 // pred_check_branch
          %168 = sbr.rel (%p166) target = $region20
        $region19: #{tpu_custom_call.1} parent=11 // pred_region
          %s169 = smul.u32 4, %s33
          %p170 = scmp.lt.s32.totalorder %s169, 3
          %s171 = scalar_select %p170, %s169, 3
          %s172 = smul.addr %s171, 8
          %s173 = scalar_lea.vmem %s3, %s172
          %s174 = smul.u32 4, %s33
        $region20: #{tpu_custom_call.1} parent=11 // pred_fallthru
          _
      $region12: #{tpu_custom_call.1} parent=5 // pred_fallthru
        _
      %p175 = scmp.lt.s32.totalorder %s24, 2
      // Predicated region
      $region21: #{tpu_custom_call.1} parent=5 // pred_check
        %p176 = pneg %p175
      $region22: #{tpu_custom_call.1} parent=5 // pred_check_branch
        %178 = sbr.rel (%p176) target = $region24
      $region23: #{tpu_custom_call.1} parent=5 // pred_region
        // Predicated region
        $region25: #{tpu_custom_call.1} parent=23 // pred_check
          %p179 = pneg %p82
        $region26: #{tpu_custom_call.1} parent=23 // pred_check_branch
          %181 = sbr.rel (%p179) target = $region28
        $region27: #{tpu_custom_call.1} parent=23 // pred_region
          %s182 = sand.u32 %s72, 1
          %s183 = scalar_lea.sflag [#allocation5], %s182
          %s184 = sand.u32 %s72, 1
          %s185 = smul.addr %s184, 256
          %s186 = scalar_lea.vmem [#allocation4], %s185
          %s187 = smul.u32 64, %s32
          %189 = vsyncadd %s183, 0
          %s190 = smul.addr %s187, 4
          %s191 = scalar_lea.hbm %s2, %s190
          %s192 = sshll.u32 %s191, 4
          %s193 = int_to_ptr.hbm [resolvable:$true] %s192
          %s194 = sshll.u32 %s186, 4
          %s195 = int_to_ptr.vmem [resolvable:$true] %s194
          %200 = dma.hbm_to_vmem [thread:$0]  %s193, 4096, %s195, %s183, 64, 64, 4
        $region28: #{tpu_custom_call.1} parent=23 // pred_fallthru
          _
      $region24: #{tpu_custom_call.1} parent=5 // pred_fallthru
        _
      %p201 = scmp.le.s32.totalorder 1, %s24
      %p202 = scmp.lt.s32.totalorder %s24, 3
      %p203 = pnand %p201, %p202
      %p204 = pneg %p203
      // Predicated region
      $region29: #{tpu_custom_call.1} parent=5 // pred_check
        _
      $region30: #{tpu_custom_call.1} parent=5 // pred_check_branch
        %206 = sbr.rel (%p203) target = $region32
      $region31: #{tpu_custom_call.1} parent=5 // pred_region
        %s207 = ssub.s32 %s24, 1
        %s208 = sand.u32 %s75, 1
        %s209 = scalar_lea.sflag [#allocation5], %s208
        %s210 = sand.u32 %s75, 1
        %s211 = smul.addr %s210, 256
        %s212 = scalar_lea.vmem [#allocation4], %s211
        // Predicated region
        $region33: #{tpu_custom_call.1} parent=31 // pred_check
          %p213 = pneg %p88
        $region34: #{tpu_custom_call.1} parent=31 // pred_check_branch
          %215 = sbr.rel (%p213) target = $region36
        $region35: #{tpu_custom_call.1} parent=31 // pred_region
          %217 = dma.done %s209, 4096
        $region36: #{tpu_custom_call.1} parent=31 // pred_fallthru
          _
        %s218 = smul.u32 4, %s33
        %p219 = scmp.lt.s32.totalorder %s218, 3
        %s220 = scalar_select %p219, %s218, 3
        %s221 = smul.addr %s220, 4
        %s222 = scalar_lea.vmem %s1, %s221
        %p223 = pneg %p62
        %p224 = pneg %p59
        %s225 = sand.u32 %s75, 1
        %s226 = scalar_lea.sflag [#allocation5], %s225
        %s227 = sand.u32 %s75, 1
        %s228 = smul.addr %s227, 256
        %s229 = scalar_lea.vmem [#allocation4], %s228
        %p230 = pneg %p88
        %p231 = pneg %p85
        %s232 = smul.u32 4, %s33
        %p233 = scmp.lt.s32.totalorder %s232, 3
        %s234 = scalar_select %p233, %s232, 3
        %s235 = smul.addr %s234, 8
        %s236 = scalar_lea.vmem %s3, %s235
        %p237 = pneg %p114
        %p238 = pneg %p111
        %p239 = pneg %p142
        %p240 = pneg %p139
        %s241 = sand.u32 %s129, 1
        %s242 = scalar_lea.sflag [#allocation6], %s241
        %s243 = sand.u32 %s129, 1
        %s244 = smul.addr %s243, 128
        %s245 = scalar_lea.vmem [#allocation7], %s244
        %s246 = smul.u32 4, %s33
        %p247 = scmp.lt.s32.totalorder %s246, 3
        %s248 = scalar_select %p247, %s246, 3
        %s249 = smul.addr %s248, 4
        %s250 = scalar_lea.vmem %s1, %s249
        %s251 = smul.u32 4, %s33
        %s252 = smul.u32 64, %s34
        %s253 = smul.u32 4, %s33
        %p254 = scmp.lt.s32.totalorder %s253, 3
        %s255 = scalar_select %p254, %s253, 3
        %s256 = smul.addr %s255, 8
        %s257 = scalar_lea.vmem %s3, %s256
        %s258 = smul.u32 4, %s33
        %s259 = smul.u32 4, %s33
        %s260 = smul.u32 4, %s34
        %v261 = vld [vmem:[%s250] sm:$0xf]
        %v262 = vld [vmem:[%s250 + $0x4] sm:$0xf]
        %v263 = vld [vmem:[%s250 + $0x8] sm:$0xf]
        %v264 = vld [vmem:[%s250 + $0xc] sm:$0xf]
        %v265 = vld [vmem:[%s212] sm:$0xf]
        %v266 = vld [vmem:[%s212 + $0x4] sm:$0xf]
        %v267 = vld [vmem:[%s212 + $0x8] sm:$0xf]
        %v268 = vld [vmem:[%s212 + $0xc] sm:$0xf]
        %v269 = vld [vmem:[%s212 + $0x10] sm:$0xf]
        %v270 = vld [vmem:[%s212 + $0x14] sm:$0xf]
        %v271 = vld [vmem:[%s212 + $0x18] sm:$0xf]
        %v272 = vld [vmem:[%s212 + $0x1c] sm:$0xf]
        %v273 = vld [vmem:[%s212 + $0x20] sm:$0xf]
        %v274 = vld [vmem:[%s212 + $0x24] sm:$0xf]
        %v275 = vld [vmem:[%s212 + $0x28] sm:$0xf]
        %v276 = vld [vmem:[%s212 + $0x2c] sm:$0xf]
        %v277 = vld [vmem:[%s212 + $0x30] sm:$0xf]
        %v278 = vld [vmem:[%s212 + $0x34] sm:$0xf]
        %v279 = vld [vmem:[%s212 + $0x38] sm:$0xf]
        %v280 = vld [vmem:[%s212 + $0x3c] sm:$0xf]
        %v281 = vld [vmem:[%s212 + $0x40] sm:$0xf]
        %v282 = vld [vmem:[%s212 + $0x44] sm:$0xf]
        %v283 = vld [vmem:[%s212 + $0x48] sm:$0xf]
        %v284 = vld [vmem:[%s212 + $0x4c] sm:$0xf]
        %v285 = vld [vmem:[%s212 + $0x50] sm:$0xf]
        %v286 = vld [vmem:[%s212 + $0x54] sm:$0xf]
        %v287 = vld [vmem:[%s212 + $0x58] sm:$0xf]
        %v288 = vld [vmem:[%s212 + $0x5c] sm:$0xf]
        %v289 = vld [vmem:[%s212 + $0x60] sm:$0xf]
        %v290 = vld [vmem:[%s212 + $0x64] sm:$0xf]
        %v291 = vld [vmem:[%s212 + $0x68] sm:$0xf]
        %v292 = vld [vmem:[%s212 + $0x6c] sm:$0xf]
        %v293 = vld [vmem:[%s212 + $0x70] sm:$0xf]
        %v294 = vld [vmem:[%s212 + $0x74] sm:$0xf]
        %v295 = vld [vmem:[%s212 + $0x78] sm:$0xf]
        %v296 = vld [vmem:[%s212 + $0x7c] sm:$0xf]
        %v297 = vld [vmem:[%s212 + $0x80] sm:$0xf]
        %v298 = vld [vmem:[%s212 + $0x84] sm:$0xf]
        %v299 = vld [vmem:[%s212 + $0x88] sm:$0xf]
        %v300 = vld [vmem:[%s212 + $0x8c] sm:$0xf]
        %v301 = vld [vmem:[%s212 + $0x90] sm:$0xf]
        %v302 = vld [vmem:[%s212 + $0x94] sm:$0xf]
        %v303 = vld [vmem:[%s212 + $0x98] sm:$0xf]
        %v304 = vld [vmem:[%s212 + $0x9c] sm:$0xf]
        %v305 = vld [vmem:[%s212 + $0xa0] sm:$0xf]
        %v306 = vld [vmem:[%s212 + $0xa4] sm:$0xf]
        %v307 = vld [vmem:[%s212 + $0xa8] sm:$0xf]
        %v308 = vld [vmem:[%s212 + $0xac] sm:$0xf]
        %v309 = vld [vmem:[%s212 + $0xb0] sm:$0xf]
        %v310 = vld [vmem:[%s212 + $0xb4] sm:$0xf]
        %v311 = vld [vmem:[%s212 + $0xb8] sm:$0xf]
        %v312 = vld [vmem:[%s212 + $0xbc] sm:$0xf]
        %v313 = vld [vmem:[%s212 + $0xc0] sm:$0xf]
        %v314 = vld [vmem:[%s212 + $0xc4] sm:$0xf]
        %v315 = vld [vmem:[%s212 + $0xc8] sm:$0xf]
        %v316 = vld [vmem:[%s212 + $0xcc] sm:$0xf]
        %v317 = vld [vmem:[%s212 + $0xd0] sm:$0xf]
        %v318 = vld [vmem:[%s212 + $0xd4] sm:$0xf]
        %v319 = vld [vmem:[%s212 + $0xd8] sm:$0xf]
        %v320 = vld [vmem:[%s212 + $0xdc] sm:$0xf]
        %v321 = vld [vmem:[%s212 + $0xe0] sm:$0xf]
        %v322 = vld [vmem:[%s212 + $0xe4] sm:$0xf]
        %v323 = vld [vmem:[%s212 + $0xe8] sm:$0xf]
        %v324 = vld [vmem:[%s212 + $0xec] sm:$0xf]
        %v325 = vld [vmem:[%s212 + $0xf0] sm:$0xf]
        %v326 = vld [vmem:[%s212 + $0xf4] sm:$0xf]
        %v327 = vld [vmem:[%s212 + $0xf8] sm:$0xf]
        %v328 = vld [vmem:[%s212 + $0xfc] sm:$0xf]
        %v333 = vunpack.c.l.b16 %v261
        %v334 = vunpack.c.l.b16 %v262
        %v335 = vunpack.c.l.b16 %v263
        %v336 = vunpack.c.l.b16 %v264
        %v337 = vpack.c.b16 %v334, %v333
        %v338 = vpack.c.b16 %v336, %v335
        %v405 = vunpack.c.l.b16 %v265
        %v406 = vunpack.c.l.b16 %v266
        %v407 = vunpack.c.l.b16 %v267
        %v408 = vunpack.c.l.b16 %v268
        %v409 = vunpack.c.l.b16 %v269
        %v410 = vunpack.c.l.b16 %v270
        %v411 = vunpack.c.l.b16 %v271
        %v412 = vunpack.c.l.b16 %v272
        %v413 = vunpack.c.l.b16 %v273
        %v414 = vunpack.c.l.b16 %v274
        %v415 = vunpack.c.l.b16 %v275
        %v416 = vunpack.c.l.b16 %v276
        %v417 = vunpack.c.l.b16 %v277
        %v418 = vunpack.c.l.b16 %v278
        %v419 = vunpack.c.l.b16 %v279
        %v420 = vunpack.c.l.b16 %v280
        %v421 = vunpack.c.l.b16 %v281
        %v422 = vunpack.c.l.b16 %v282
        %v423 = vunpack.c.l.b16 %v283
        %v424 = vunpack.c.l.b16 %v284
        %v425 = vunpack.c.l.b16 %v285
        %v426 = vunpack.c.l.b16 %v286
        %v427 = vunpack.c.l.b16 %v287
        %v428 = vunpack.c.l.b16 %v288
        %v429 = vunpack.c.l.b16 %v289
        %v430 = vunpack.c.l.b16 %v290
        %v431 = vunpack.c.l.b16 %v291
        %v432 = vunpack.c.l.b16 %v292
        %v433 = vunpack.c.l.b16 %v293
        %v434 = vunpack.c.l.b16 %v294
        %v435 = vunpack.c.l.b16 %v295
        %v436 = vunpack.c.l.b16 %v296
        %v437 = vunpack.c.l.b16 %v297
        %v438 = vunpack.c.l.b16 %v298
        %v439 = vunpack.c.l.b16 %v299
        %v440 = vunpack.c.l.b16 %v300
        %v441 = vunpack.c.l.b16 %v301
        %v442 = vunpack.c.l.b16 %v302
        %v443 = vunpack.c.l.b16 %v303
        %v444 = vunpack.c.l.b16 %v304
        %v445 = vunpack.c.l.b16 %v305
        %v446 = vunpack.c.l.b16 %v306
        %v447 = vunpack.c.l.b16 %v307
        %v448 = vunpack.c.l.b16 %v308
        %v449 = vunpack.c.l.b16 %v309
        %v450 = vunpack.c.l.b16 %v310
        %v451 = vunpack.c.l.b16 %v311
        %v452 = vunpack.c.l.b16 %v312
        %v453 = vunpack.c.l.b16 %v313
        %v454 = vunpack.c.l.b16 %v314
        %v455 = vunpack.c.l.b16 %v315
        %v456 = vunpack.c.l.b16 %v316
        %v457 = vunpack.c.l.b16 %v317
        %v458 = vunpack.c.l.b16 %v318
        %v459 = vunpack.c.l.b16 %v319
        %v460 = vunpack.c.l.b16 %v320
        %v461 = vunpack.c.l.b16 %v321
        %v462 = vunpack.c.l.b16 %v322
        %v463 = vunpack.c.l.b16 %v323
        %v464 = vunpack.c.l.b16 %v324
        %v465 = vunpack.c.l.b16 %v325
        %v466 = vunpack.c.l.b16 %v326
        %v467 = vunpack.c.l.b16 %v327
        %v468 = vunpack.c.l.b16 %v328
        %v469 = vpack.c.b16 %v406, %v405
        %v470 = vpack.c.b16 %v408, %v407
        %v471 = vpack.c.b16 %v410, %v409
        %v472 = vpack.c.b16 %v412, %v411
        %v473 = vpack.c.b16 %v414, %v413
        %v474 = vpack.c.b16 %v416, %v415
        %v475 = vpack.c.b16 %v418, %v417
        %v476 = vpack.c.b16 %v420, %v419
        %v477 = vpack.c.b16 %v422, %v421
        %v478 = vpack.c.b16 %v424, %v423
        %v479 = vpack.c.b16 %v426, %v425
        %v480 = vpack.c.b16 %v428, %v427
        %v481 = vpack.c.b16 %v430, %v429
        %v482 = vpack.c.b16 %v432, %v431
        %v483 = vpack.c.b16 %v434, %v433
        %v484 = vpack.c.b16 %v436, %v435
        %v485 = vpack.c.b16 %v438, %v437
        %v486 = vpack.c.b16 %v440, %v439
        %v487 = vpack.c.b16 %v442, %v441
        %v488 = vpack.c.b16 %v444, %v443
        %v489 = vpack.c.b16 %v446, %v445
        %v490 = vpack.c.b16 %v448, %v447
        %v491 = vpack.c.b16 %v450, %v449
        %v492 = vpack.c.b16 %v452, %v451
        %v493 = vpack.c.b16 %v454, %v453
        %v494 = vpack.c.b16 %v456, %v455
        %v495 = vpack.c.b16 %v458, %v457
        %v496 = vpack.c.b16 %v460, %v459
        %v497 = vpack.c.b16 %v462, %v461
        %v498 = vpack.c.b16 %v464, %v463
        %v499 = vpack.c.b16 %v466, %v465
        %v500 = vpack.c.b16 %v468, %v467
        %533 = vmatpush.bf16.xpose.msra.mxu0 %v476
        %534 = vmatpush.bf16.xpose.msra.mxu0 %v475
        %535 = vmatpush.bf16.xpose.msra.mxu0 %v474
        %536 = vmatpush.bf16.xpose.msra.mxu0 %v473
        %537 = vmatpush.bf16.xpose.msra.mxu0 %v472
        %538 = vmatpush.bf16.xpose.msra.mxu0 %v471
        %539 = vmatpush.bf16.xpose.msra.mxu0 %v470
        %540 = vmatpush.bf16.xpose.msra.mxu0 %v469
        %541 = vmatmul.bf16.gmra.mxu0 %v337
        %v542 = vpop.f32.mrf.mxu0
        %v543 = vadd.f32 0.0, %v542
        %v544 = vpop.f32.mrf.mxu0
        %v545 = vadd.f32 0.0, %v544
        %546 = vmatmul.bf16.gmra.mxu0 %v338
        %v547 = vpop.f32.mrf.mxu0
        %v548 = vadd.f32 0.0, %v547
        %v549 = vpop.f32.mrf.mxu0
        %v550 = vadd.f32 0.0, %v549
        %551 = vdwg.mxu0
        %552 = vmatpush.bf16.xpose.msra.mxu0 %v484
        %553 = vmatpush.bf16.xpose.msra.mxu0 %v483
        %554 = vmatpush.bf16.xpose.msra.mxu0 %v482
        %555 = vmatpush.bf16.xpose.msra.mxu0 %v481
        %556 = vmatpush.bf16.xpose.msra.mxu0 %v480
        %557 = vmatpush.bf16.xpose.msra.mxu0 %v479
        %558 = vmatpush.bf16.xpose.msra.mxu0 %v478
        %559 = vmatpush.bf16.xpose.msra.mxu0 %v477
        %560 = vmatmul.bf16.gmra.mxu0 %v337
        %v561 = vpop.f32.mrf.mxu0
        %v562 = vadd.f32 0.0, %v561
        %v563 = vpop.f32.mrf.mxu0
        %v564 = vadd.f32 0.0, %v563
        %565 = vmatmul.bf16.gmra.mxu0 %v338
        %v566 = vpop.f32.mrf.mxu0
        %v567 = vadd.f32 0.0, %v566
        %v568 = vpop.f32.mrf.mxu0
        %v569 = vadd.f32 0.0, %v568
        %570 = vdwg.mxu0
        %571 = vmatpush.bf16.xpose.msra.mxu0 %v492
        %572 = vmatpush.bf16.xpose.msra.mxu0 %v491
        %573 = vmatpush.bf16.xpose.msra.mxu0 %v490
        %574 = vmatpush.bf16.xpose.msra.mxu0 %v489
        %575 = vmatpush.bf16.xpose.msra.mxu0 %v488
        %576 = vmatpush.bf16.xpose.msra.mxu0 %v487
        %577 = vmatpush.bf16.xpose.msra.mxu0 %v486
        %578 = vmatpush.bf16.xpose.msra.mxu0 %v485
        %579 = vmatmul.bf16.gmra.mxu0 %v337
        %v580 = vpop.f32.mrf.mxu0
        %v581 = vadd.f32 0.0, %v580
        %v582 = vpop.f32.mrf.mxu0
        %v583 = vadd.f32 0.0, %v582
        %584 = vmatmul.bf16.gmra.mxu0 %v338
        %v585 = vpop.f32.mrf.mxu0
        %v586 = vadd.f32 0.0, %v585
        %v587 = vpop.f32.mrf.mxu0
        %v588 = vadd.f32 0.0, %v587
        %589 = vdwg.mxu0
        %590 = vmatpush.bf16.xpose.msra.mxu0 %v500
        %591 = vmatpush.bf16.xpose.msra.mxu0 %v499
        %592 = vmatpush.bf16.xpose.msra.mxu0 %v498
        %593 = vmatpush.bf16.xpose.msra.mxu0 %v497
        %594 = vmatpush.bf16.xpose.msra.mxu0 %v496
        %595 = vmatpush.bf16.xpose.msra.mxu0 %v495
        %596 = vmatpush.bf16.xpose.msra.mxu0 %v494
        %597 = vmatpush.bf16.xpose.msra.mxu0 %v493
        %598 = vmatmul.bf16.gmra.mxu0 %v337
        %v599 = vpop.f32.mrf.mxu0
        %v600 = vadd.f32 0.0, %v599
        %v601 = vpop.f32.mrf.mxu0
        %v602 = vadd.f32 0.0, %v601
        %603 = vmatmul.bf16.gmra.mxu0 %v338
        %v604 = vpop.f32.mrf.mxu0
        %v605 = vadd.f32 0.0, %v604
        %v606 = vpop.f32.mrf.mxu0
        %v607 = vadd.f32 0.0, %v606
        %608 = vdwg.mxu0
        %s609 = smul.u32 %s33, 2
        %s610 = sadd.s32 %s609, %s34
        %s611 = sld [smem:[#allocation3 + %s610]]
        %p612 = scmp.ne.s32.totalorder %s611, 0
        %p613 = scmp.eq.s32.totalorder %s611, 0
        // Predicated region
        $region37: #{tpu_custom_call.1} parent=31 // pred_check
          %p614 = pneg %p613
        $region38: #{tpu_custom_call.1} parent=31 // pred_check_branch
          %616 = sbr.rel (%p614) target = $region40
        $region39: #{tpu_custom_call.1} parent=31 // pred_region
          %v617 = vmul.f32 %v543, 32.0
          %v618 = vmul.f32 %v562, 32.0
          %v619 = vmul.f32 %v581, 32.0
          %v620 = vmul.f32 %v600, 32.0
          %v621 = vmul.f32 %v545, 32.0
          %v622 = vmul.f32 %v564, 32.0
          %v623 = vmul.f32 %v583, 32.0
          %v624 = vmul.f32 %v602, 32.0
          %v625 = vmul.f32 %v548, 32.0
          %v626 = vmul.f32 %v567, 32.0
          %v627 = vmul.f32 %v586, 32.0
          %v628 = vmul.f32 %v605, 32.0
          %v629 = vmul.f32 %v550, 32.0
          %v630 = vmul.f32 %v569, 32.0
          %v631 = vmul.f32 %v588, 32.0
          %v632 = vmul.f32 %v607, 32.0
          %633 = vst [vmem:[%s245] sm:$0xff] %v617
          %634 = vst [vmem:[%s245 + $0x8] sm:$0xff] %v618
          %635 = vst [vmem:[%s245 + $0x10] sm:$0xff] %v619
          %636 = vst [vmem:[%s245 + $0x18] sm:$0xff] %v620
          %637 = vst [vmem:[%s245 + $0x20] sm:$0xff] %v621
          %638 = vst [vmem:[%s245 + $0x28] sm:$0xff] %v622
          %639 = vst [vmem:[%s245 + $0x30] sm:$0xff] %v623
          %640 = vst [vmem:[%s245 + $0x38] sm:$0xff] %v624
          %641 = vst [vmem:[%s245 + $0x40] sm:$0xff] %v625
          %642 = vst [vmem:[%s245 + $0x48] sm:$0xff] %v626
          %643 = vst [vmem:[%s245 + $0x50] sm:$0xff] %v627
          %644 = vst [vmem:[%s245 + $0x58] sm:$0xff] %v628
          %645 = vst [vmem:[%s245 + $0x60] sm:$0xff] %v629
          %646 = vst [vmem:[%s245 + $0x68] sm:$0xff] %v630
          %647 = vst [vmem:[%s245 + $0x70] sm:$0xff] %v631
          %648 = vst [vmem:[%s245 + $0x78] sm:$0xff] %v632
        $region40: #{tpu_custom_call.1} parent=31 // pred_fallthru
          _
        // Predicated region
        $region41: #{tpu_custom_call.1} parent=31 // pred_check
          %p649 = pneg %p612
        $region42: #{tpu_custom_call.1} parent=31 // pred_check_branch
          %651 = sbr.rel (%p649) target = $region44
        $region43: #{tpu_custom_call.1} parent=31 // pred_region
          %v652 = vmul.f32 %v543, %v543
          %v653 = vmul.f32 %v562, %v562
          %v654 = vmul.f32 %v581, %v581
          %v655 = vmul.f32 %v600, %v600
          %v656 = vmul.f32 %v545, %v545
          %v657 = vmul.f32 %v564, %v564
          %v658 = vmul.f32 %v583, %v583
          %v659 = vmul.f32 %v602, %v602
          %v660 = vmul.f32 %v548, %v548
          %v661 = vmul.f32 %v567, %v567
          %v662 = vmul.f32 %v586, %v586
          %v663 = vmul.f32 %v605, %v605
          %v664 = vmul.f32 %v550, %v550
          %v665 = vmul.f32 %v569, %v569
          %v666 = vmul.f32 %v588, %v588
          %v667 = vmul.f32 %v607, %v607
          %v668 = vsub.f32 1.0, %v652
          %v669 = vsub.f32 1.0, %v653
          %v670 = vsub.f32 1.0, %v654
          %v671 = vsub.f32 1.0, %v655
          %v672 = vsub.f32 1.0, %v656
          %v673 = vsub.f32 1.0, %v657
          %v674 = vsub.f32 1.0, %v658
          %v675 = vsub.f32 1.0, %v659
          %v676 = vsub.f32 1.0, %v660
          %v677 = vsub.f32 1.0, %v661
          %v678 = vsub.f32 1.0, %v662
          %v679 = vsub.f32 1.0, %v663
          %v680 = vsub.f32 1.0, %v664
          %v681 = vsub.f32 1.0, %v665
          %v682 = vsub.f32 1.0, %v666
          %v683 = vsub.f32 1.0, %v667
          %v684 = vmax.f32 %v668, 0.0
          %v685 = vmax.f32 %v669, 0.0
          %v686 = vmax.f32 %v670, 0.0
          %v687 = vmax.f32 %v671, 0.0
          %v688 = vmax.f32 %v672, 0.0
          %v689 = vmax.f32 %v673, 0.0
          %v690 = vmax.f32 %v674, 0.0
          %v691 = vmax.f32 %v675, 0.0
          %v692 = vmax.f32 %v676, 0.0
          %v693 = vmax.f32 %v677, 0.0
          %v694 = vmax.f32 %v678, 0.0
          %v695 = vmax.f32 %v679, 0.0
          %v696 = vmax.f32 %v680, 0.0
          %v697 = vmax.f32 %v681, 0.0
          %v698 = vmax.f32 %v682, 0.0
          %v699 = vmax.f32 %v683, 0.0
          %v700 = vrsqrt.pop %v684
          %v701 = vmul.f32 %v700, %v684
          %v702 = vmul.f32 %v701, %v700
          %v703 = vmul.f32 0.5, %v702
          %v704 = vsub.f32 1.5, %v703
          %v705 = vmul.f32 %v700, %v704
          %v706 = vmul.f32 %v684, %v705
          %vm707 = vcmp.eq.f32.partialorder %v684, inf
          %v708 = vsel %vm707, %v684, %v706
          %vm709 = vcmp.eq.f32.partialorder %v684, 0.0
          %v710 = vand.u32 %v684, 2147483648
          %v711 = vsel %vm709, %v710, %v708
          %v712 = vrsqrt.pop %v685
          %v713 = vmul.f32 %v712, %v685
          %v714 = vmul.f32 %v713, %v712
          %v715 = vmul.f32 0.5, %v714
          %v716 = vsub.f32 1.5, %v715
          %v717 = vmul.f32 %v712, %v716
          %v718 = vmul.f32 %v685, %v717
          %vm719 = vcmp.eq.f32.partialorder %v685, inf
          %v720 = vsel %vm719, %v685, %v718
          %vm721 = vcmp.eq.f32.partialorder %v685, 0.0
          %v722 = vand.u32 %v685, 2147483648
          %v723 = vsel %vm721, %v722, %v720
          %v724 = vrsqrt.pop %v686
          %v725 = vmul.f32 %v724, %v686
          %v726 = vmul.f32 %v725, %v724
          %v727 = vmul.f32 0.5, %v726
          %v728 = vsub.f32 1.5, %v727
          %v729 = vmul.f32 %v724, %v728
          %v730 = vmul.f32 %v686, %v729
          %vm731 = vcmp.eq.f32.partialorder %v686, inf
          %v732 = vsel %vm731, %v686, %v730
          %vm733 = vcmp.eq.f32.partialorder %v686, 0.0
          %v734 = vand.u32 %v686, 2147483648
          %v735 = vsel %vm733, %v734, %v732
          %v736 = vrsqrt.pop %v687
          %v737 = vmul.f32 %v736, %v687
          %v738 = vmul.f32 %v737, %v736
          %v739 = vmul.f32 0.5, %v738
          %v740 = vsub.f32 1.5, %v739
          %v741 = vmul.f32 %v736, %v740
          %v742 = vmul.f32 %v687, %v741
          %vm743 = vcmp.eq.f32.partialorder %v687, inf
          %v744 = vsel %vm743, %v687, %v742
          %vm745 = vcmp.eq.f32.partialorder %v687, 0.0
          %v746 = vand.u32 %v687, 2147483648
          %v747 = vsel %vm745, %v746, %v744
          %v748 = vrsqrt.pop %v688
          %v749 = vmul.f32 %v748, %v688
          %v750 = vmul.f32 %v749, %v748
          %v751 = vmul.f32 0.5, %v750
          %v752 = vsub.f32 1.5, %v751
          %v753 = vmul.f32 %v748, %v752
          %v754 = vmul.f32 %v688, %v753
          %vm755 = vcmp.eq.f32.partialorder %v688, inf
          %v756 = vsel %vm755, %v688, %v754
          %vm757 = vcmp.eq.f32.partialorder %v688, 0.0
          %v758 = vand.u32 %v688, 2147483648
          %v759 = vsel %vm757, %v758, %v756
          %v760 = vrsqrt.pop %v689
          %v761 = vmul.f32 %v760, %v689
          %v762 = vmul.f32 %v761, %v760
          %v763 = vmul.f32 0.5, %v762
          %v764 = vsub.f32 1.5, %v763
          %v765 = vmul.f32 %v760, %v764
          %v766 = vmul.f32 %v689, %v765
          %vm767 = vcmp.eq.f32.partialorder %v689, inf
          %v768 = vsel %vm767, %v689, %v766
          %vm769 = vcmp.eq.f32.partialorder %v689, 0.0
          %v770 = vand.u32 %v689, 2147483648
          %v771 = vsel %vm769, %v770, %v768
          %v772 = vrsqrt.pop %v690
          %v773 = vmul.f32 %v772, %v690
          %v774 = vmul.f32 %v773, %v772
          %v775 = vmul.f32 0.5, %v774
          %v776 = vsub.f32 1.5, %v775
          %v777 = vmul.f32 %v772, %v776
          %v778 = vmul.f32 %v690, %v777
          %vm779 = vcmp.eq.f32.partialorder %v690, inf
          %v780 = vsel %vm779, %v690, %v778
          %vm781 = vcmp.eq.f32.partialorder %v690, 0.0
          %v782 = vand.u32 %v690, 2147483648
          %v783 = vsel %vm781, %v782, %v780
          %v784 = vrsqrt.pop %v691
          %v785 = vmul.f32 %v784, %v691
          %v786 = vmul.f32 %v785, %v784
          %v787 = vmul.f32 0.5, %v786
          %v788 = vsub.f32 1.5, %v787
          %v789 = vmul.f32 %v784, %v788
          %v790 = vmul.f32 %v691, %v789
          %vm791 = vcmp.eq.f32.partialorder %v691, inf
          %v792 = vsel %vm791, %v691, %v790
          %vm793 = vcmp.eq.f32.partialorder %v691, 0.0
          %v794 = vand.u32 %v691, 2147483648
          %v795 = vsel %vm793, %v794, %v792
          %v796 = vrsqrt.pop %v692
          %v797 = vmul.f32 %v796, %v692
          %v798 = vmul.f32 %v797, %v796
          %v799 = vmul.f32 0.5, %v798
          %v800 = vsub.f32 1.5, %v799
          %v801 = vmul.f32 %v796, %v800
          %v802 = vmul.f32 %v692, %v801
          %vm803 = vcmp.eq.f32.partialorder %v692, inf
          %v804 = vsel %vm803, %v692, %v802
          %vm805 = vcmp.eq.f32.partialorder %v692, 0.0
          %v806 = vand.u32 %v692, 2147483648
          %v807 = vsel %vm805, %v806, %v804
          %v808 = vrsqrt.pop %v693
          %v809 = vmul.f32 %v808, %v693
          %v810 = vmul.f32 %v809, %v808
          %v811 = vmul.f32 0.5, %v810
          %v812 = vsub.f32 1.5, %v811
          %v813 = vmul.f32 %v808, %v812
          %v814 = vmul.f32 %v693, %v813
          %vm815 = vcmp.eq.f32.partialorder %v693, inf
          %v816 = vsel %vm815, %v693, %v814
          %vm817 = vcmp.eq.f32.partialorder %v693, 0.0
          %v818 = vand.u32 %v693, 2147483648
          %v819 = vsel %vm817, %v818, %v816
          %v820 = vrsqrt.pop %v694
          %v821 = vmul.f32 %v820, %v694
          %v822 = vmul.f32 %v821, %v820
          %v823 = vmul.f32 0.5, %v822
          %v824 = vsub.f32 1.5, %v823
          %v825 = vmul.f32 %v820, %v824
          %v826 = vmul.f32 %v694, %v825
          %vm827 = vcmp.eq.f32.partialorder %v694, inf
          %v828 = vsel %vm827, %v694, %v826
          %vm829 = vcmp.eq.f32.partialorder %v694, 0.0
          %v830 = vand.u32 %v694, 2147483648
          %v831 = vsel %vm829, %v830, %v828
          %v832 = vrsqrt.pop %v695
          %v833 = vmul.f32 %v832, %v695
          %v834 = vmul.f32 %v833, %v832
          %v835 = vmul.f32 0.5, %v834
          %v836 = vsub.f32 1.5, %v835
          %v837 = vmul.f32 %v832, %v836
          %v838 = vmul.f32 %v695, %v837
          %vm839 = vcmp.eq.f32.partialorder %v695, inf
          %v840 = vsel %vm839, %v695, %v838
          %vm841 = vcmp.eq.f32.partialorder %v695, 0.0
          %v842 = vand.u32 %v695, 2147483648
          %v843 = vsel %vm841, %v842, %v840
          %v844 = vrsqrt.pop %v696
          %v845 = vmul.f32 %v844, %v696
          %v846 = vmul.f32 %v845, %v844
          %v847 = vmul.f32 0.5, %v846
          %v848 = vsub.f32 1.5, %v847
          %v849 = vmul.f32 %v844, %v848
          %v850 = vmul.f32 %v696, %v849
          %vm851 = vcmp.eq.f32.partialorder %v696, inf
          %v852 = vsel %vm851, %v696, %v850
          %vm853 = vcmp.eq.f32.partialorder %v696, 0.0
          %v854 = vand.u32 %v696, 2147483648
          %v855 = vsel %vm853, %v854, %v852
          %v856 = vrsqrt.pop %v697
          %v857 = vmul.f32 %v856, %v697
          %v858 = vmul.f32 %v857, %v856
          %v859 = vmul.f32 0.5, %v858
          %v860 = vsub.f32 1.5, %v859
          %v861 = vmul.f32 %v856, %v860
          %v862 = vmul.f32 %v697, %v861
          %vm863 = vcmp.eq.f32.partialorder %v697, inf
          %v864 = vsel %vm863, %v697, %v862
          %vm865 = vcmp.eq.f32.partialorder %v697, 0.0
          %v866 = vand.u32 %v697, 2147483648
          %v867 = vsel %vm865, %v866, %v864
          %v868 = vrsqrt.pop %v698
          %v869 = vmul.f32 %v868, %v698
          %v870 = vmul.f32 %v869, %v868
          %v871 = vmul.f32 0.5, %v870
          %v872 = vsub.f32 1.5, %v871
          %v873 = vmul.f32 %v868, %v872
          %v874 = vmul.f32 %v698, %v873
          %vm875 = vcmp.eq.f32.partialorder %v698, inf
          %v876 = vsel %vm875, %v698, %v874
          %vm877 = vcmp.eq.f32.partialorder %v698, 0.0
          %v878 = vand.u32 %v698, 2147483648
          %v879 = vsel %vm877, %v878, %v876
          %v880 = vrsqrt.pop %v699
          %v881 = vmul.f32 %v880, %v699
          %v882 = vmul.f32 %v881, %v880
          %v883 = vmul.f32 0.5, %v882
          %v884 = vsub.f32 1.5, %v883
          %v885 = vmul.f32 %v880, %v884
          %v886 = vmul.f32 %v699, %v885
          %vm887 = vcmp.eq.f32.partialorder %v699, inf
          %v888 = vsel %vm887, %v699, %v886
          %vm889 = vcmp.eq.f32.partialorder %v699, 0.0
          %v890 = vand.u32 %v699, 2147483648
          %v891 = vsel %vm889, %v890, %v888
          %v892 = vmul.f32 %v543, 0.87758255
          %v893 = vmul.f32 %v562, 0.87758255
          %v894 = vmul.f32 %v581, 0.87758255
          %v895 = vmul.f32 %v600, 0.87758255
          %v896 = vmul.f32 %v545, 0.87758255
          %v897 = vmul.f32 %v564, 0.87758255
          %v898 = vmul.f32 %v583, 0.87758255
          %v899 = vmul.f32 %v602, 0.87758255
          %v900 = vmul.f32 %v548, 0.87758255
          %v901 = vmul.f32 %v567, 0.87758255
          %v902 = vmul.f32 %v586, 0.87758255
          %v903 = vmul.f32 %v605, 0.87758255
          %v904 = vmul.f32 %v550, 0.87758255
          %v905 = vmul.f32 %v569, 0.87758255
          %v906 = vmul.f32 %v588, 0.87758255
          %v907 = vmul.f32 %v607, 0.87758255
          %v908 = vmul.f32 %v711, 0.47942555
          %v909 = vmul.f32 %v723, 0.47942555
          %v910 = vmul.f32 %v735, 0.47942555
          %v911 = vmul.f32 %v747, 0.47942555
          %v912 = vmul.f32 %v759, 0.47942555
          %v913 = vmul.f32 %v771, 0.47942555
          %v914 = vmul.f32 %v783, 0.47942555
          %v915 = vmul.f32 %v795, 0.47942555
          %v916 = vmul.f32 %v807, 0.47942555
          %v917 = vmul.f32 %v819, 0.47942555
          %v918 = vmul.f32 %v831, 0.47942555
          %v919 = vmul.f32 %v843, 0.47942555
          %v920 = vmul.f32 %v855, 0.47942555
          %v921 = vmul.f32 %v867, 0.47942555
          %v922 = vmul.f32 %v879, 0.47942555
          %v923 = vmul.f32 %v891, 0.47942555
          %v924 = vsub.f32 %v892, %v908
          %v925 = vsub.f32 %v893, %v909
          %v926 = vsub.f32 %v894, %v910
          %v927 = vsub.f32 %v895, %v911
          %v928 = vsub.f32 %v896, %v912
          %v929 = vsub.f32 %v897, %v913
          %v930 = vsub.f32 %v898, %v914
          %v931 = vsub.f32 %v899, %v915
          %v932 = vsub.f32 %v900, %v916
          %v933 = vsub.f32 %v901, %v917
          %v934 = vsub.f32 %v902, %v918
          %v935 = vsub.f32 %v903, %v919
          %v936 = vsub.f32 %v904, %v920
          %v937 = vsub.f32 %v905, %v921
          %v938 = vsub.f32 %v906, %v922
          %v939 = vsub.f32 %v907, %v923
          %vm940 = vcmp.gt.f32.partialorder %v543, -0.87758255
          %vm941 = vcmp.gt.f32.partialorder %v562, -0.87758255
          %vm942 = vcmp.gt.f32.partialorder %v581, -0.87758255
          %vm943 = vcmp.gt.f32.partialorder %v600, -0.87758255
          %vm944 = vcmp.gt.f32.partialorder %v545, -0.87758255
          %vm945 = vcmp.gt.f32.partialorder %v564, -0.87758255
          %vm946 = vcmp.gt.f32.partialorder %v583, -0.87758255
          %vm947 = vcmp.gt.f32.partialorder %v602, -0.87758255
          %vm948 = vcmp.gt.f32.partialorder %v548, -0.87758255
          %vm949 = vcmp.gt.f32.partialorder %v567, -0.87758255
          %vm950 = vcmp.gt.f32.partialorder %v586, -0.87758255
          %vm951 = vcmp.gt.f32.partialorder %v605, -0.87758255
          %vm952 = vcmp.gt.f32.partialorder %v550, -0.87758255
          %vm953 = vcmp.gt.f32.partialorder %v569, -0.87758255
          %vm954 = vcmp.gt.f32.partialorder %v588, -0.87758255
          %vm955 = vcmp.gt.f32.partialorder %v607, -0.87758255
          %v956 = vsub.f32 %v543, 0.23971277
          %v957 = vsub.f32 %v562, 0.23971277
          %v958 = vsub.f32 %v581, 0.23971277
          %v959 = vsub.f32 %v600, 0.23971277
          %v960 = vsub.f32 %v545, 0.23971277
          %v961 = vsub.f32 %v564, 0.23971277
          %v962 = vsub.f32 %v583, 0.23971277
          %v963 = vsub.f32 %v602, 0.23971277
          %v964 = vsub.f32 %v548, 0.23971277
          %v965 = vsub.f32 %v567, 0.23971277
          %v966 = vsub.f32 %v586, 0.23971277
          %v967 = vsub.f32 %v605, 0.23971277
          %v968 = vsub.f32 %v550, 0.23971277
          %v969 = vsub.f32 %v569, 0.23971277
          %v970 = vsub.f32 %v588, 0.23971277
          %v971 = vsub.f32 %v607, 0.23971277
          %v972 = vsel %vm940, %v924, %v956
          %v973 = vsel %vm941, %v925, %v957
          %v974 = vsel %vm942, %v926, %v958
          %v975 = vsel %vm943, %v927, %v959
          %v976 = vsel %vm944, %v928, %v960
          %v977 = vsel %vm945, %v929, %v961
          %v978 = vsel %vm946, %v930, %v962
          %v979 = vsel %vm947, %v931, %v963
          %v980 = vsel %vm948, %v932, %v964
          %v981 = vsel %vm949, %v933, %v965
          %v982 = vsel %vm950, %v934, %v966
          %v983 = vsel %vm951, %v935, %v967
          %v984 = vsel %vm952, %v936, %v968
          %v985 = vsel %vm953, %v937, %v969
          %v986 = vsel %vm954, %v938, %v970
          %v987 = vsel %vm955, %v939, %v971
          %s988 = smul.u32 %s34, 512
          %v989 = vlaneseq
          %v990 = vand.u32 %v989, 127
          %v991 = vadd.s32 %v990, 128
          %v992 = vadd.s32 %v990, 256
          %v993 = vadd.s32 %v990, 384
          %v994 = vstv %s988
          %v995 = vadd.s32 %v994, %v990
          %v996 = vadd.s32 %v994, %v991
          %v997 = vadd.s32 %v994, %v992
          %v998 = vadd.s32 %v994, %v993
          %v999 = vld [vmem:[%s257] sm:$0xff]
          %v1000 = vld [vmem:[%s257 + $0x8] sm:$0xff]
          %v1001 = vld [vmem:[%s257 + $0x10] sm:$0xff]
          %v1002 = vld [vmem:[%s257 + $0x18] sm:$0xff]
          %1003 = vset.pattern.permute.xlu0 0
          %1004 = vperm.xlu0 %1003, %v999
          %v1005 = vpop.permute.xlu0 %1004
          %1006 = vset.pattern.permute.xlu0 0
          %1007 = vperm.xlu0 %1006, %v1000
          %v1008 = vpop.permute.xlu0 %1007
          %1009 = vset.pattern.permute.xlu0 0
          %1010 = vperm.xlu0 %1009, %v1001
          %v1011 = vpop.permute.xlu0 %1010
          %1012 = vset.pattern.permute.xlu0 0
          %1013 = vperm.xlu0 %1012, %v1002
          %v1014 = vpop.permute.xlu0 %1013
          %vm1015 = vcmp.eq.s32.totalorder %v995, %v1005
          %vm1016 = vcmp.eq.s32.totalorder %v996, %v1005
          %vm1017 = vcmp.eq.s32.totalorder %v997, %v1005
          %vm1018 = vcmp.eq.s32.totalorder %v998, %v1005
          %vm1019 = vcmp.eq.s32.totalorder %v995, %v1008
          %vm1020 = vcmp.eq.s32.totalorder %v996, %v1008
          %vm1021 = vcmp.eq.s32.totalorder %v997, %v1008
          %vm1022 = vcmp.eq.s32.totalorder %v998, %v1008
          %vm1023 = vcmp.eq.s32.totalorder %v995, %v1011
          %vm1024 = vcmp.eq.s32.totalorder %v996, %v1011
          %vm1025 = vcmp.eq.s32.totalorder %v997, %v1011
          %vm1026 = vcmp.eq.s32.totalorder %v998, %v1011
          %vm1027 = vcmp.eq.s32.totalorder %v995, %v1014
          %vm1028 = vcmp.eq.s32.totalorder %v996, %v1014
          %vm1029 = vcmp.eq.s32.totalorder %v997, %v1014
          %vm1030 = vcmp.eq.s32.totalorder %v998, %v1014
          %v1031 = vsel %vm1015, %v972, %v543
          %v1032 = vsel %vm1016, %v973, %v562
          %v1033 = vsel %vm1017, %v974, %v581
          %v1034 = vsel %vm1018, %v975, %v600
          %v1035 = vsel %vm1019, %v976, %v545
          %v1036 = vsel %vm1020, %v977, %v564
          %v1037 = vsel %vm1021, %v978, %v583
          %v1038 = vsel %vm1022, %v979, %v602
          %v1039 = vsel %vm1023, %v980, %v548
          %v1040 = vsel %vm1024, %v981, %v567
          %v1041 = vsel %vm1025, %v982, %v586
          %v1042 = vsel %vm1026, %v983, %v605
          %v1043 = vsel %vm1027, %v984, %v550
          %v1044 = vsel %vm1028, %v985, %v569
          %v1045 = vsel %vm1029, %v986, %v588
          %v1046 = vsel %vm1030, %v987, %v607
          %v1047 = vmul.f32 %v1031, 32.0
          %v1048 = vmul.f32 %v1032, 32.0
          %v1049 = vmul.f32 %v1033, 32.0
          %v1050 = vmul.f32 %v1034, 32.0
          %v1051 = vmul.f32 %v1035, 32.0
          %v1052 = vmul.f32 %v1036, 32.0
          %v1053 = vmul.f32 %v1037, 32.0
          %v1054 = vmul.f32 %v1038, 32.0
          %v1055 = vmul.f32 %v1039, 32.0
          %v1056 = vmul.f32 %v1040, 32.0
          %v1057 = vmul.f32 %v1041, 32.0
          %v1058 = vmul.f32 %v1042, 32.0
          %v1059 = vmul.f32 %v1043, 32.0
          %v1060 = vmul.f32 %v1044, 32.0
          %v1061 = vmul.f32 %v1045, 32.0
          %v1062 = vmul.f32 %v1046, 32.0
          %1063 = vst [vmem:[%s245] sm:$0xff] %v1047
          %1064 = vst [vmem:[%s245 + $0x8] sm:$0xff] %v1048
          %1065 = vst [vmem:[%s245 + $0x10] sm:$0xff] %v1049
          %1066 = vst [vmem:[%s245 + $0x18] sm:$0xff] %v1050
          %1067 = vst [vmem:[%s245 + $0x20] sm:$0xff] %v1051
          %1068 = vst [vmem:[%s245 + $0x28] sm:$0xff] %v1052
          %1069 = vst [vmem:[%s245 + $0x30] sm:$0xff] %v1053
          %1070 = vst [vmem:[%s245 + $0x38] sm:$0xff] %v1054
          %1071 = vst [vmem:[%s245 + $0x40] sm:$0xff] %v1055
          %1072 = vst [vmem:[%s245 + $0x48] sm:$0xff] %v1056
          %1073 = vst [vmem:[%s245 + $0x50] sm:$0xff] %v1057
          %1074 = vst [vmem:[%s245 + $0x58] sm:$0xff] %v1058
          %1075 = vst [vmem:[%s245 + $0x60] sm:$0xff] %v1059
          %1076 = vst [vmem:[%s245 + $0x68] sm:$0xff] %v1060
          %1077 = vst [vmem:[%s245 + $0x70] sm:$0xff] %v1061
          %1078 = vst [vmem:[%s245 + $0x78] sm:$0xff] %v1062
        $region44: #{tpu_custom_call.1} parent=31 // pred_fallthru
          _
        %s1079 = sand.u32 %s129, 1
        %s1080 = scalar_lea.sflag [#allocation6], %s1079
        %s1081 = sand.u32 %s129, 1
        %s1082 = smul.addr %s1081, 128
        %s1083 = scalar_lea.vmem [#allocation7], %s1082
        // Predicated region
        $region45: #{tpu_custom_call.1} parent=31 // pred_check
          %p1084 = pneg %p139
        $region46: #{tpu_custom_call.1} parent=31 // pred_check_branch
          %1086 = sbr.rel (%p1084) target = $region48
        $region47: #{tpu_custom_call.1} parent=31 // pred_region
          %s1087 = smul.u32 4, %s33
          %s1088 = smul.u32 4, %s34
          %1090 = vsyncadd %s1080, 0
          %s1091 = smul.addr %s1087, 8
          %s1092 = sadd.s32 %s1088, %s1091
          %s1093 = smul.addr %s1092, 8
          %s1094 = scalar_lea.hbm %s4, %s1093
          %s1095 = sshll.u32 %s1083, 4
          %s1096 = int_to_ptr.vmem [resolvable:$true] %s1095
          %s1097 = sshll.u32 %s1094, 4
          %s1098 = int_to_ptr.hbm [resolvable:$true] %s1097
          %1103 = dma.vmem_to_hbm [thread:$0]  %s1096, 2048, %s1098, %s1080, 512, 1024, 32
        $region48: #{tpu_custom_call.1} parent=31 // pred_fallthru
          _
      $region32: #{tpu_custom_call.1} parent=5 // pred_fallthru
        _
      %p1104 = scmp.le.s32.totalorder 2, %s24
      // Predicated region
      $region49: #{tpu_custom_call.1} parent=5 // pred_check
        %p1105 = pneg %p1104
      $region50: #{tpu_custom_call.1} parent=5 // pred_check_branch
        %1107 = sbr.rel (%p1105) target = $region52
      $region51: #{tpu_custom_call.1} parent=5 // pred_region
        %s1108 = ssub.s32 %s24, 2
        // Predicated region
        $region53: #{tpu_custom_call.1} parent=51 // pred_check
          %p1109 = pneg %p145
        $region54: #{tpu_custom_call.1} parent=51 // pred_check_branch
          %1111 = sbr.rel (%p1109) target = $region56
        $region55: #{tpu_custom_call.1} parent=51 // pred_region
          %s1112 = sand.u32 %s130, 1
          %s1113 = scalar_lea.sflag [#allocation6], %s1112
          %s1114 = sand.u32 %s130, 1
          %s1115 = smul.addr %s1114, 128
          %s1116 = scalar_lea.vmem [#allocation7], %s1115
          %1118 = dma.done %s1113, 2048
        $region56: #{tpu_custom_call.1} parent=51 // pred_fallthru
          _
      $region52: #{tpu_custom_call.1} parent=5 // pred_fallthru
        _
    $region6: #{tpu_custom_call.1} parent=1 // loop_footer
      %s28 = sadd.s32 1, %s24
    $region7: #{tpu_custom_call.1} parent=1 // loop_footer_branch
      %23 = sbr.rel target = $region3
    $region8: #{tpu_custom_call.1} parent=1 // loop_exit
      _
    %1119 = vsyncpa [#allocation5], 1
    %s1120 = scalar_lea.sflag [#allocation5], 1
    %1121 = vsyncpa %s1120, 1
    %1122 = vsyncpa [#allocation6], 1
    %s1123 = scalar_lea.sflag [#allocation6], 1
    %1124 = vsyncpa %s1123, 1

</llo_original>
